<compile_context>
chip_gen: v7x
topology: tpu7x:2x2x1
jax: 0.10.0
libtpu: 0.0.40
codegen_flags: <defaults>
</compile_context>

<pallas_src>
import functools

import jax
import jax.numpy as jnp
from jax.experimental import pallas as pl
from jax.experimental.pallas import tpu as pltpu


def _fused_linear_kernel(x_ref, w_ref, p_ref, o_ref, *,
                         apply_bn_relu, negative_slope, eps):
    """One N-tile of: y = x @ W + b ; optionally y = LeakyReLU(BatchNorm1d(y)).

    Grid = (N // tn,). The full K reduction happens in a single jnp.dot (the
    whole (K, tn) bf16 weight tile is in VMEM), so no accumulator is needed.
    x_ref/w_ref are bf16; accumulation and the whole epilogue are f32.
    p_ref rows: [bias] or [bias, gamma, beta] (f32).
    """
    y = jnp.dot(x_ref[...], w_ref[...], preferred_element_type=jnp.float32)
    y = y + p_ref[0:1, :]                              # bias, broadcast over batch
    if apply_bn_relu:
        mean = jnp.mean(y, axis=0, keepdims=True)
        ctr = y - mean
        var = jnp.mean(ctr * ctr, axis=0, keepdims=True)   # biased var (training mode)
        y = ctr * jax.lax.rsqrt(var + eps)
        y = y * p_ref[1:2, :] + p_ref[2:3, :]          # gamma, beta
        y = jnp.where(y >= 0, y, negative_slope * y)   # LeakyReLU(0.01)
    o_ref[...] = y.astype(o_ref.dtype)


def fused_linear(x, w, b, gamma=None, beta=None, *, tn,
                 out_dtype=jnp.float32, negative_slope=0.01, eps=1e-5):
    """x: (B, K), w: (K, N) [stored bf16], b/gamma/beta: (N,) f32.

    Returns (B, N) in out_dtype. If gamma/beta are None the BN + LeakyReLU
    epilogue is skipped (pure linear, final layer).
    """
    B, K = x.shape
    Kw, N = w.shape
    assert K == Kw and N % tn == 0, (K, Kw, N, tn)
    assert tn % 128 == 0, tn

    # bf16 operands for the MXU; no-ops if already bf16.
    x = x.astype(jnp.bfloat16)
    w = w.astype(jnp.bfloat16)

    apply_bn_relu = gamma is not None
    if apply_bn_relu:
        params = jnp.stack([b, gamma, beta], axis=0).astype(jnp.float32)  # (3, N)
    else:
        params = b.reshape(1, N).astype(jnp.float32)                      # (1, N)
    n_rows = params.shape[0]

    kernel = functools.partial(_fused_linear_kernel,
                               apply_bn_relu=apply_bn_relu,
                               negative_slope=negative_slope,
                               eps=eps)

    out_bytes = jnp.dtype(out_dtype).itemsize
    cost = pl.CostEstimate(
        flops=2 * B * K * N,
        transcendentals=0,
        bytes_accessed=2 * K * N + 2 * B * K + out_bytes * B * N + 4 * n_rows * N,
    )

    return pl.pallas_call(
        kernel,
        out_shape=jax.ShapeDtypeStruct((B, N), out_dtype),
        grid_spec=pltpu.PrefetchScalarGridSpec(
            num_scalar_prefetch=0,
            grid=(N // tn,),
            in_specs=[
                # x is tiny (<= 8x4096 bf16 = 64 KB): fully resident, constant index.
                pl.BlockSpec((B, K), lambda n: (0, 0)),
                # W streams one full-K, tn-wide bf16 tile per grid step.
                pl.BlockSpec((K, tn), lambda n: (0, n)),
                # packed bias[/gamma/beta] tile.
                pl.BlockSpec((n_rows, tn), lambda n: (0, n)),
            ],
            out_specs=pl.BlockSpec((B, tn), lambda n: (0, n)),
        ),
        compiler_params=pltpu.CompilerParams(
            dimension_semantics=("parallel",),
            # Largest double-buffered bf16 W tile is 2 x 6 MB (layer 4, tn=768);
            # 32 MB leaves generous headroom on every generation (v7x: 64 MiB phys).
            vmem_limit_bytes=32 << 20,
        ),
        cost_estimate=cost,
    )(x, w, params)


def init_params(key):
    """Deterministic parameter init matching GeneratorW3.__init__ shapes.

    Weights are stored as bf16 (streamed dtype); biases and BN params as f32.
    """
    dims = [(512, 1024), (1024, 2048), (2048, 4096), (4096, 9216)]
    params = {}
    for i, (fan_in, fan_out) in enumerate(dims, start=1):
        key, kw, kb = jax.random.split(key, 3)
        bound = 1.0 / jnp.sqrt(fan_in)
        # stored as (in, out) so the kernel computes x @ W (== x @ W_torch.T)
        w = jax.random.uniform(kw, (fan_in, fan_out), jnp.float32, -bound, bound)
        params[f"w{i}"] = w.astype(jnp.bfloat16)
        params[f"b{i}"] = jax.random.uniform(
            kb, (fan_out,), jnp.float32, -bound, bound)
    for i, c in enumerate([1024, 2048, 4096], start=1):
        params[f"gamma{i}"] = jnp.ones((c,), jnp.float32)   # BN weight init
        params[f"beta{i}"] = jnp.zeros((c,), jnp.float32)   # BN bias init
    return params


def generator_w3_forward(x, params):
    """Forward pass of GeneratorW3 (BN in training mode, LeakyReLU slope 0.01).

    Per-layer N tiles give even grid-step counts (2/4/8/12) for v7x megacore
    balance and small bf16 W tiles (0.5/1/2/6 MB) to minimize the exposed
    pipeline-fill DMA of each call. Intermediate activations are bf16 (they are
    the next layer's MXU operand anyway); the final output is f32.
    """
    h = fused_linear(x, params["w1"], params["b1"],
                     params["gamma1"], params["beta1"],
                     tn=512, out_dtype=jnp.bfloat16)    # 2 steps, 0.5 MB W tile
    h = fused_linear(h, params["w2"], params["b2"],
                     params["gamma2"], params["beta2"],
                     tn=512, out_dtype=jnp.bfloat16)    # 4 steps, 1 MB W tile
    h = fused_linear(h, params["w3"], params["b3"],
                     params["gamma3"], params["beta3"],
                     tn=512, out_dtype=jnp.bfloat16)    # 8 steps, 2 MB W tile
    h = fused_linear(h, params["w4"], params["b4"],
                     tn=768, out_dtype=jnp.float32)     # 12 steps, 6 MB W tile
    return h.reshape(-1, 32, 32, 3, 3)


if __name__ == "__main__":
    key = jax.random.PRNGKey(0)
    key, kx = jax.random.split(key)
    B = 8  # small batch; must be >1 for BatchNorm batch statistics
    x = jax.random.normal(kx, (B, 512), jnp.float32)

    params = init_params(key)

    out = generator_w3_forward(x, params)
    out = jax.block_until_ready(out)

    assert out.shape == (B, 32, 32, 3, 3), out.shape
    assert out.dtype == jnp.float32
    assert bool(jnp.all(jnp.isfinite(out)))
    print("KERNEL_OK")
</pallas_src>

<mosaic_0001>
module attributes {stable_mosaic.version = 11 : i64} {
  func.func @_fused_linear_kernel(%arg0: i32, %arg1: memref<8x512xbf16, #tpu.memory_space<vmem>>, %arg2: memref<512x512xbf16, #tpu.memory_space<vmem>>, %arg3: memref<3x512xf32, #tpu.memory_space<vmem>>, %arg4: memref<8x512xbf16, #tpu.memory_space<vmem>>) attributes {dimension_semantics = [#tpu.dimension_semantics<parallel>], iteration_bounds = array<i64: 2>, scalar_prefetch = 0 : i64, scratch_operands = 0 : i64, tpu.core_type = #tpu.core_type<tc>, window_params = [{pipeline_mode = #tpu.pipeline_mode<synchronous>, transform_indices = @transform_0, window_bounds = array<i64: 8, 512>}, {transform_indices = @transform_1, window_bounds = array<i64: 512, 512>}, {transform_indices = @transform_2, window_bounds = array<i64: 3, 512>}, {transform_indices = @transform_3, window_bounds = array<i64: 8, 512>}]} {
    %c0 = arith.constant 0 : index
    %c0_0 = arith.constant 0 : index
    %0 = vector.load %arg1[%c0, %c0_0] : memref<8x512xbf16, #tpu.memory_space<vmem>>, vector<8x512xbf16>
    %c0_1 = arith.constant 0 : index
    %c0_2 = arith.constant 0 : index
    %1 = vector.load %arg2[%c0_1, %c0_2] : memref<512x512xbf16, #tpu.memory_space<vmem>>, vector<512x512xbf16>
    %cst = arith.constant dense<0.000000e+00> : vector<8x512xf32>
    %2 = tpu.matmul %0, %1, %cst {dimension_numbers = #tpu.dot_dimension_numbers<[1], [0], [0], [1], [0, 0, 1, 1], [], []>} : vector<8x512xbf16>, vector<512x512xbf16>, vector<8x512xf32> -> vector<8x512xf32>
    %c0_3 = arith.constant 0 : index
    %c0_4 = arith.constant 0 : index
    %3 = vector.load %arg3[%c0_3, %c0_4] : memref<3x512xf32, #tpu.memory_space<vmem>>, vector<1x512xf32>
    %4 = vector.broadcast %3 : vector<1x512xf32> to vector<8x512xf32>
    %5 = arith.addf %2, %4 : vector<8x512xf32>
    %cst_5 = arith.constant dense<0.000000e+00> : vector<512xf32>
    %6 = vector.multi_reduction <add>, %5, %cst_5 [0] : vector<8x512xf32> to vector<512xf32>
    %7 = vector.shape_cast %6 : vector<512xf32> to vector<1x512xf32>
    %cst_6 = arith.constant 8.000000e+00 : f32
    %8 = vector.broadcast %cst_6 : f32 to vector<1x512xf32>
    %9 = arith.divf %7, %8 : vector<1x512xf32>
    %10 = vector.broadcast %9 : vector<1x512xf32> to vector<8x512xf32>
    %11 = arith.subf %5, %10 : vector<8x512xf32>
    %12 = arith.mulf %11, %11 : vector<8x512xf32>
    %cst_7 = arith.constant dense<0.000000e+00> : vector<512xf32>
    %13 = vector.multi_reduction <add>, %12, %cst_7 [0] : vector<8x512xf32> to vector<512xf32>
    %14 = vector.shape_cast %13 : vector<512xf32> to vector<1x512xf32>
    %cst_8 = arith.constant 8.000000e+00 : f32
    %15 = vector.broadcast %cst_8 : f32 to vector<1x512xf32>
    %16 = arith.divf %14, %15 : vector<1x512xf32>
    %cst_9 = arith.constant 9.99999974E-6 : f32
    %17 = vector.broadcast %cst_9 : f32 to vector<1x512xf32>
    %18 = arith.addf %16, %17 : vector<1x512xf32>
    %19 = math.rsqrt %18 : vector<1x512xf32>
    %20 = vector.broadcast %19 : vector<1x512xf32> to vector<8x512xf32>
    %21 = arith.mulf %11, %20 : vector<8x512xf32>
    %c1 = arith.constant 1 : index
    %c0_10 = arith.constant 0 : index
    %22 = vector.load %arg3[%c1, %c0_10] : memref<3x512xf32, #tpu.memory_space<vmem>>, vector<1x512xf32>
    %23 = vector.broadcast %22 : vector<1x512xf32> to vector<8x512xf32>
    %24 = arith.mulf %21, %23 : vector<8x512xf32>
    %c2 = arith.constant 2 : index
    %c0_11 = arith.constant 0 : index
    %25 = vector.load %arg3[%c2, %c0_11] : memref<3x512xf32, #tpu.memory_space<vmem>>, vector<1x512xf32>
    %26 = vector.broadcast %25 : vector<1x512xf32> to vector<8x512xf32>
    %27 = arith.addf %24, %26 : vector<8x512xf32>
    %cst_12 = arith.constant 0.000000e+00 : f32
    %28 = vector.broadcast %cst_12 : f32 to vector<8x512xf32>
    %29 = arith.cmpf oge, %27, %28 : vector<8x512xf32>
    %cst_13 = arith.constant 0.00999999977 : f32
    %30 = vector.broadcast %cst_13 : f32 to vector<8x512xf32>
    %31 = arith.mulf %30, %27 : vector<8x512xf32>
    %32 = arith.select %29, %27, %31 : vector<8x512xi1>, vector<8x512xf32>
    %33 = arith.truncf %32 : vector<8x512xf32> to vector<8x512xbf16>
    %c0_14 = arith.constant 0 : index
    %c0_15 = arith.constant 0 : index
    %34 = vector.load %arg4[%c0_14, %c0_15] : memref<8x512xbf16, #tpu.memory_space<vmem>>, vector<8x512xbf16>
    tpu.vector_store %arg4[%c0_14, %c0_15], %33 {strides = array<i32>} : memref<8x512xbf16, #tpu.memory_space<vmem>>, vector<8x512xbf16>,
    return
  }
  func.func @transform_0(%arg0: i32) -> (i32, i32) {
    %c0_i32 = arith.constant 0 : i32
    %c0_i32_0 = arith.constant 0 : i32
    %c0_i32_1 = arith.constant 0 : i32
    return %c0_i32, %c0_i32_0 : i32, i32
  }
  func.func @transform_1(%arg0: i32) -> (i32, i32) {
    %c0_i32 = arith.constant 0 : i32
    %c0_i32_0 = arith.constant 0 : i32
    return %c0_i32, %arg0 : i32, i32
  }
  func.func @transform_2(%arg0: i32) -> (i32, i32) {
    %c0_i32 = arith.constant 0 : i32
    %c0_i32_0 = arith.constant 0 : i32
    return %c0_i32, %arg0 : i32, i32
  }
  func.func @transform_3(%arg0: i32) -> (i32, i32) {
    %c0_i32 = arith.constant 0 : i32
    %c0_i32_0 = arith.constant 0 : i32
    return %c0_i32, %arg0 : i32, i32
  }
}

</mosaic_0001>

<llo_original>
// kernel: tpu_custom_call.1
$region0: #{tpu_custom_call.1}
  #allocation0 [shape = 'u32[]', space=smem, size = 0x4, offset = 0x4, fixed_abs, tag = 'smem constant byte address 0x4 - core index']
  #allocation1 [shape = 'u32[144,128]{1,0:T(1,128)}', space=vmem, size = 0x12000, scoped, tag = 'internal scratch']
  %s0 = inlined_call_operand.hbm [shape: bf16[8,512], index: 0, kind: input, shape index: {}]
  %s1 = inlined_call_operand.hbm [shape: bf16[512,1024], index: 1, kind: input, shape index: {}]
  %s2 = inlined_call_operand.hbm [shape: f32[3,1024], index: 2, kind: input, shape index: {}]
  %s3 = inlined_call_operand.hbm [shape: bf16[8,1024], index: 3, kind: output, shape index: {}]
  %s4 = sld [smem:[#allocation0]]
  $region57: #{tpu_custom_call.1} parent=0
    _
  %s6 = ssub.s32 1, %s4
  %s7 = scalar_select 0, %s6, %s4
  $region1: #{tpu_custom_call.1} parent=0
    #allocation2 [shape = 'u8[8192]{0}', space=vmem, size = 0x2000, scoped, tag = 'input window, operand 0, single buffered']
    #allocation3 [shape = 's32[2]{0}', space=sflag, size = 0x8, scoped, tag = 'scoped memory for tpu_custom_call.1']
    #allocation4 [shape = 's32[2]{0}', space=sflag, size = 0x8, scoped, tag = 'scoped memory for tpu_custom_call.1']
    #allocation5 [shape = 'u8[1048576]{0}', space=vmem, size = 0x100000, scoped, tag = 'input window, operand 1']
    #allocation6 [shape = 's32[2]{0}', space=sflag, size = 0x8, scoped, tag = 'scoped memory for tpu_custom_call.1']
    #allocation7 [shape = 'u8[16384]{0}', space=vmem, size = 0x4000, scoped, tag = 'input window, operand 2']
    #allocation8 [shape = 'u8[16384]{0}', space=vmem, size = 0x4000, scoped, tag = 'output window, operand 0']
    %8 = vsyncpa [#allocation3], 0
    %9 = vsyncpa [#allocation6], 0
    %s10 = scalar_lea.sflag [#allocation6], 1
    %11 = vsyncpa %s10, 0
    %12 = vsyncpa [#allocation4], 0
    %s13 = scalar_lea.sflag [#allocation4], 1
    %14 = vsyncpa %s13, 0
    loop: start=0, step=1, limit=4
    $region2: #{tpu_custom_call.1} parent=1 // loop_pre_header
      _
    $region3: #{tpu_custom_call.1} parent=1 // loop_header
      %s16 = sphi 0, %s20
      %p17 = scmp.ge.s32.totalorder %s16, 4
      %s24 = sphi 0, %s24
      %s26 = sphi 0, %s24
      %s27 = sphi 0, %s26
      %s41 = sphi 0, %s27
      %s47 = sphi 0, %s49
      %s50 = sphi 0, %s47
      %s51 = sphi 0, %s50
      %s67 = sphi 0, %s51
      %s73 = sphi 0, %s75
      %s76 = sphi 0, %s73
      %s77 = sphi 0, %s76
      %s93 = sphi 0, %s77
      %s99 = sphi 0, %s101
      %s102 = sphi 0, %s99
      %s103 = sphi 0, %s102
      %s119 = sphi 0, %s103
    $region4: #{tpu_custom_call.1} parent=1 // loop_header_branch
      %19 = sbr.rel (%p17) target = $region8
    $region5: #{tpu_custom_call.1} parent=1 // loop_body
      %s21 = ssub.s32 %s16, 1
      %s22 = ssub.s32 %s16, 2
      %s23 = sadd.s32 %s16, 1
      %s25 = sadd.s32 %s24, 1
      %p28 = scmp.eq.s32.totalorder %s16, 1
      %p29 = scmp.ne.s32.totalorder %s24, %s26
      %p30 = scmp.eq.s32.totalorder %s16, 0
      %p31 = por %p29, %p30
      %p32 = scmp.ne.s32.totalorder %s24, %s26
      %p33 = scmp.eq.s32.totalorder %s21, 1
      %p34 = por %p32, %p33
      %p35 = scmp.ne.s32.totalorder %s26, %s27
      %p36 = scmp.eq.s32.totalorder %s21, 0
      %p37 = por %p35, %p36
      %p38 = scmp.ne.s32.totalorder %s26, %s27
      %p39 = scmp.eq.s32.totalorder %s22, 1
      %p40 = por %p38, %p39
      %p42 = scmp.ne.s32.totalorder %s27, %s41
      %p43 = scmp.eq.s32.totalorder %s22, 0
      %p44 = por %p42, %p43
      %s45 = ssub.s32 %s16, %s23
      %p46 = scmp.eq.s32.totalorder %s45, 0
      %s48 = sadd.s32 %s47, 1
      %s49 = scalar_select %p46, %s47, %s48
      %p52 = pneg %p46
      %p53 = scmp.eq.s32.totalorder %s16, 1
      %p54 = por %p52, %p53
      %p55 = scmp.ne.s32.totalorder %s47, %s50
      %p56 = scmp.eq.s32.totalorder %s16, 0
      %p57 = por %p55, %p56
      %p58 = scmp.ne.s32.totalorder %s47, %s50
      %p59 = scmp.eq.s32.totalorder %s21, 1
      %p60 = por %p58, %p59
      %p61 = scmp.ne.s32.totalorder %s50, %s51
      %p62 = scmp.eq.s32.totalorder %s21, 0
      %p63 = por %p61, %p62
      %p64 = scmp.ne.s32.totalorder %s50, %s51
      %p65 = scmp.eq.s32.totalorder %s22, 1
      %p66 = por %p64, %p65
      %p68 = scmp.ne.s32.totalorder %s51, %s67
      %p69 = scmp.eq.s32.totalorder %s22, 0
      %p70 = por %p68, %p69
      %s71 = ssub.s32 %s16, %s23
      %p72 = scmp.eq.s32.totalorder %s71, 0
      %s74 = sadd.s32 %s73, 1
      %s75 = scalar_select %p72, %s73, %s74
      %p78 = pneg %p72
      %p79 = scmp.eq.s32.totalorder %s16, 1
      %p80 = por %p78, %p79
      %p81 = scmp.ne.s32.totalorder %s73, %s76
      %p82 = scmp.eq.s32.totalorder %s16, 0
      %p83 = por %p81, %p82
      %p84 = scmp.ne.s32.totalorder %s73, %s76
      %p85 = scmp.eq.s32.totalorder %s21, 1
      %p86 = por %p84, %p85
      %p87 = scmp.ne.s32.totalorder %s76, %s77
      %p88 = scmp.eq.s32.totalorder %s21, 0
      %p89 = por %p87, %p88
      %p90 = scmp.ne.s32.totalorder %s76, %s77
      %p91 = scmp.eq.s32.totalorder %s22, 1
      %p92 = por %p90, %p91
      %p94 = scmp.ne.s32.totalorder %s77, %s93
      %p95 = scmp.eq.s32.totalorder %s22, 0
      %p96 = por %p94, %p95
      %s97 = ssub.s32 %s16, %s23
      %p98 = scmp.eq.s32.totalorder %s97, 0
      %s100 = sadd.s32 %s99, 1
      %s101 = scalar_select %p98, %s99, %s100
      %p104 = pneg %p98
      %p105 = scmp.eq.s32.totalorder %s16, 1
      %p106 = por %p104, %p105
      %p107 = scmp.ne.s32.totalorder %s99, %s102
      %p108 = scmp.eq.s32.totalorder %s16, 0
      %p109 = por %p107, %p108
      %p110 = scmp.ne.s32.totalorder %s99, %s102
      %p111 = scmp.eq.s32.totalorder %s21, 1
      %p112 = por %p110, %p111
      %p113 = scmp.ne.s32.totalorder %s102, %s103
      %p114 = scmp.eq.s32.totalorder %s21, 0
      %p115 = por %p113, %p114
      %p116 = scmp.ne.s32.totalorder %s102, %s103
      %p117 = scmp.eq.s32.totalorder %s22, 1
      %p118 = por %p116, %p117
      %p120 = scmp.ne.s32.totalorder %s103, %s119
      %p121 = scmp.eq.s32.totalorder %s22, 0
      %p122 = por %p120, %p121
      %p123 = scmp.le.s32.totalorder 1, %s16
      %p124 = scmp.lt.s32.totalorder %s16, 3
      %p125 = pnand %p123, %p124
      %p126 = pneg %p125
      // Predicated region
      $region9: #{tpu_custom_call.1} parent=5 // pred_check
        _
      $region10: #{tpu_custom_call.1} parent=5 // pred_check_branch
        %128 = sbr.rel (%p125) target = $region12
      $region11: #{tpu_custom_call.1} parent=5 // pred_region
        %s129 = ssub.s32 %s16, 1
        // Predicated region
        $region13: #{tpu_custom_call.1} parent=11 // pred_check
          %p130 = pneg %p37
        $region14: #{tpu_custom_call.1} parent=11 // pred_check_branch
          %132 = sbr.rel (%p130) target = $region16
        $region15: #{tpu_custom_call.1} parent=11 // pred_region
          %s134 = ssub.s32 256, 256
          %135 = vsyncadd [#allocation3], %s134
          %s137 = sshll.u32 [#allocation2], 4
          %s138 = int_to_ptr.vmem [resolvable:$true] %s137
          %140 = dma.hbm_to_vmem [thread:$0]  %s0, 256, %s138, [#allocation3]
        $region16: #{tpu_custom_call.1} parent=11 // pred_fallthru
          _
      $region12: #{tpu_custom_call.1} parent=5 // pred_fallthru
        _
      %p141 = scmp.lt.s32.totalorder %s16, 2
      // Predicated region
      $region17: #{tpu_custom_call.1} parent=5 // pred_check
        %p142 = pneg %p141
      $region18: #{tpu_custom_call.1} parent=5 // pred_check_branch
        %144 = sbr.rel (%p142) target = $region20
      $region19: #{tpu_custom_call.1} parent=5 // pred_region
        // Predicated region
        $region21: #{tpu_custom_call.1} parent=19 // pred_check
          %p145 = pneg %p57
        $region22: #{tpu_custom_call.1} parent=19 // pred_check_branch
          %147 = sbr.rel (%p145) target = $region24
        $region23: #{tpu_custom_call.1} parent=19 // pred_region
          %s148 = sand.u32 %s16, 1
          %s149 = scalar_lea.sflag [#allocation6], %s148
          %s150 = sand.u32 %s47, 1
          %s151 = smul.addr %s150, 1024
          %s152 = scalar_lea.vmem [#allocation5], %s151
          %s153 = smul.u32 4, %s16
          %s155 = ssub.s32 16384, 16384
          %156 = vsyncadd %s149, %s155
          %s157 = smul.addr %s153, 64
          %s158 = scalar_lea.hbm %s1, %s157
          %s159 = sshll.u32 %s152, 4
          %s160 = int_to_ptr.vmem [resolvable:$true] %s159
          %165 = dma.hbm_to_vmem [thread:$0]  %s158, 16384, %s160, %s149, 512, 256, 16
        $region24: #{tpu_custom_call.1} parent=19 // pred_fallthru
          _
        // Predicated region
        $region25: #{tpu_custom_call.1} parent=19 // pred_check
          %p166 = pneg %p83
        $region26: #{tpu_custom_call.1} parent=19 // pred_check_branch
          %168 = sbr.rel (%p166) target = $region28
        $region27: #{tpu_custom_call.1} parent=19 // pred_region
          %s169 = sand.u32 %s16, 1
          %s170 = scalar_lea.sflag [#allocation6], %s169
          %s171 = sand.u32 %s73, 1
          %s172 = smul.addr %s171, 16
          %s173 = scalar_lea.vmem [#allocation7], %s172
          %s174 = smul.u32 4, %s16
          %s176 = ssub.s32 256, 256
          %177 = vsyncadd %s170, %s176
          %s178 = smul.addr %s174, 64
          %s179 = scalar_lea.hbm %s2, %s178
          %s181 = sshll.u32 %s173, 4
          %s182 = int_to_ptr.vmem [resolvable:$true] %s181
          %184 = dma.hbm_to_vmem [thread:$0]  %s179, 256, %s182, %s170
        $region28: #{tpu_custom_call.1} parent=19 // pred_fallthru
          _
      $region20: #{tpu_custom_call.1} parent=5 // pred_fallthru
        _
      %p185 = scmp.le.s32.totalorder 1, %s16
      %p186 = scmp.lt.s32.totalorder %s16, 3
      %p187 = pnand %p185, %p186
      %p188 = pneg %p187
      // Predicated region
      $region29: #{tpu_custom_call.1} parent=5 // pred_check
        _
      $region30: #{tpu_custom_call.1} parent=5 // pred_check_branch
        %190 = sbr.rel (%p187) target = $region32
      $region31: #{tpu_custom_call.1} parent=5 // pred_region
        %s191 = ssub.s32 %s16, 1
        // Predicated region
        $region33: #{tpu_custom_call.1} parent=31 // pred_check
          %p192 = pneg %p37
        $region34: #{tpu_custom_call.1} parent=31 // pred_check_branch
          %194 = sbr.rel (%p192) target = $region36
        $region35: #{tpu_custom_call.1} parent=31 // pred_region
          %195 = dma.done [#allocation3], 256
        $region36: #{tpu_custom_call.1} parent=31 // pred_fallthru
          _
        %s196 = sand.u32 %s21, 1
        %s197 = scalar_lea.sflag [#allocation6], %s196
        %s198 = sand.u32 %s50, 1
        %s199 = smul.addr %s198, 1024
        %s200 = scalar_lea.vmem [#allocation5], %s199
        // Predicated region
        $region37: #{tpu_custom_call.1} parent=31 // pred_check
          %p201 = pneg %p63
        $region38: #{tpu_custom_call.1} parent=31 // pred_check_branch
          %203 = sbr.rel (%p201) target = $region40
        $region39: #{tpu_custom_call.1} parent=31 // pred_region
          %204 = dma.done %s197, 16384
        $region40: #{tpu_custom_call.1} parent=31 // pred_fallthru
          _
        %s205 = sand.u32 %s21, 1
        %s206 = scalar_lea.sflag [#allocation6], %s205
        %s207 = sand.u32 %s76, 1
        %s208 = smul.addr %s207, 16
        %s209 = scalar_lea.vmem [#allocation7], %s208
        // Predicated region
        $region41: #{tpu_custom_call.1} parent=31 // pred_check
          %p210 = pneg %p89
        $region42: #{tpu_custom_call.1} parent=31 // pred_check_branch
          %212 = sbr.rel (%p210) target = $region44
        $region43: #{tpu_custom_call.1} parent=31 // pred_region
          %213 = dma.done %s206, 256
        $region44: #{tpu_custom_call.1} parent=31 // pred_fallthru
          _
        %p214 = pneg %p37
        %p215 = pneg %p34
        %s216 = sand.u32 %s21, 1
        %s217 = scalar_lea.sflag [#allocation6], %s216
        %s218 = sand.u32 %s50, 1
        %s219 = smul.addr %s218, 1024
        %s220 = scalar_lea.vmem [#allocation5], %s219
        %p221 = pneg %p63
        %p222 = pneg %p60
        %s223 = sand.u32 %s21, 1
        %s224 = scalar_lea.sflag [#allocation6], %s223
        %s225 = sand.u32 %s76, 1
        %s226 = smul.addr %s225, 16
        %s227 = scalar_lea.vmem [#allocation7], %s226
        %p228 = pneg %p89
        %p229 = pneg %p86
        %p230 = pneg %p115
        %p231 = pneg %p112
        %s232 = sand.u32 %s102, 1
        %s233 = scalar_lea.sflag [#allocation4], %s232
        %s234 = sand.u32 %s102, 1
        %s235 = smul.addr %s234, 16
        %s236 = scalar_lea.vmem [#allocation8], %s235
        %s237 = smul.u32 4, %s21
        %s238 = smul.u32 4, %s21
        %s239 = smul.u32 4, %s21
        %v240 = vld [vmem:[#allocation2] sm:$0xff]
        %v241 = vld [vmem:[#allocation2 + $0x8] sm:$0xff]
        %v242 = vld [vmem:[%s200] sm:$0xff]
        %v243 = vld [vmem:[%s200 + $0x8] sm:$0xff]
        %v244 = vld [vmem:[%s200 + $0x10] sm:$0xff]
        %v245 = vld [vmem:[%s200 + $0x18] sm:$0xff]
        %v246 = vld [vmem:[%s200 + $0x20] sm:$0xff]
        %v247 = vld [vmem:[%s200 + $0x28] sm:$0xff]
        %v248 = vld [vmem:[%s200 + $0x30] sm:$0xff]
        %v249 = vld [vmem:[%s200 + $0x38] sm:$0xff]
        %v250 = vld [vmem:[%s200 + $0x40] sm:$0xff]
        %v251 = vld [vmem:[%s200 + $0x48] sm:$0xff]
        %v252 = vld [vmem:[%s200 + $0x50] sm:$0xff]
        %v253 = vld [vmem:[%s200 + $0x58] sm:$0xff]
        %v254 = vld [vmem:[%s200 + $0x60] sm:$0xff]
        %v255 = vld [vmem:[%s200 + $0x68] sm:$0xff]
        %v256 = vld [vmem:[%s200 + $0x70] sm:$0xff]
        %v257 = vld [vmem:[%s200 + $0x78] sm:$0xff]
        %v258 = vld [vmem:[%s200 + $0x80] sm:$0xff]
        %v259 = vld [vmem:[%s200 + $0x88] sm:$0xff]
        %v260 = vld [vmem:[%s200 + $0x90] sm:$0xff]
        %v261 = vld [vmem:[%s200 + $0x98] sm:$0xff]
        %v262 = vld [vmem:[%s200 + $0xa0] sm:$0xff]
        %v263 = vld [vmem:[%s200 + $0xa8] sm:$0xff]
        %v264 = vld [vmem:[%s200 + $0xb0] sm:$0xff]
        %v265 = vld [vmem:[%s200 + $0xb8] sm:$0xff]
        %v266 = vld [vmem:[%s200 + $0xc0] sm:$0xff]
        %v267 = vld [vmem:[%s200 + $0xc8] sm:$0xff]
        %v268 = vld [vmem:[%s200 + $0xd0] sm:$0xff]
        %v269 = vld [vmem:[%s200 + $0xd8] sm:$0xff]
        %v270 = vld [vmem:[%s200 + $0xe0] sm:$0xff]
        %v271 = vld [vmem:[%s200 + $0xe8] sm:$0xff]
        %v272 = vld [vmem:[%s200 + $0xf0] sm:$0xff]
        %v273 = vld [vmem:[%s200 + $0xf8] sm:$0xff]
        %v274 = vld [vmem:[%s200 + $0x100] sm:$0xff]
        %v275 = vld [vmem:[%s200 + $0x108] sm:$0xff]
        %v276 = vld [vmem:[%s200 + $0x110] sm:$0xff]
        %v277 = vld [vmem:[%s200 + $0x118] sm:$0xff]
        %v278 = vld [vmem:[%s200 + $0x120] sm:$0xff]
        %v279 = vld [vmem:[%s200 + $0x128] sm:$0xff]
        %v280 = vld [vmem:[%s200 + $0x130] sm:$0xff]
        %v281 = vld [vmem:[%s200 + $0x138] sm:$0xff]
        %v282 = vld [vmem:[%s200 + $0x140] sm:$0xff]
        %v283 = vld [vmem:[%s200 + $0x148] sm:$0xff]
        %v284 = vld [vmem:[%s200 + $0x150] sm:$0xff]
        %v285 = vld [vmem:[%s200 + $0x158] sm:$0xff]
        %v286 = vld [vmem:[%s200 + $0x160] sm:$0xff]
        %v287 = vld [vmem:[%s200 + $0x168] sm:$0xff]
        %v288 = vld [vmem:[%s200 + $0x170] sm:$0xff]
        %v289 = vld [vmem:[%s200 + $0x178] sm:$0xff]
        %v290 = vld [vmem:[%s200 + $0x180] sm:$0xff]
        %v291 = vld [vmem:[%s200 + $0x188] sm:$0xff]
        %v292 = vld [vmem:[%s200 + $0x190] sm:$0xff]
        %v293 = vld [vmem:[%s200 + $0x198] sm:$0xff]
        %v294 = vld [vmem:[%s200 + $0x1a0] sm:$0xff]
        %v295 = vld [vmem:[%s200 + $0x1a8] sm:$0xff]
        %v296 = vld [vmem:[%s200 + $0x1b0] sm:$0xff]
        %v297 = vld [vmem:[%s200 + $0x1b8] sm:$0xff]
        %v298 = vld [vmem:[%s200 + $0x1c0] sm:$0xff]
        %v299 = vld [vmem:[%s200 + $0x1c8] sm:$0xff]
        %v300 = vld [vmem:[%s200 + $0x1d0] sm:$0xff]
        %v301 = vld [vmem:[%s200 + $0x1d8] sm:$0xff]
        %v302 = vld [vmem:[%s200 + $0x1e0] sm:$0xff]
        %v303 = vld [vmem:[%s200 + $0x1e8] sm:$0xff]
        %v304 = vld [vmem:[%s200 + $0x1f0] sm:$0xff]
        %v305 = vld [vmem:[%s200 + $0x1f8] sm:$0xff]
        %v306 = vld [vmem:[%s200 + $0x200] sm:$0xff]
        %v307 = vld [vmem:[%s200 + $0x208] sm:$0xff]
        %v308 = vld [vmem:[%s200 + $0x210] sm:$0xff]
        %v309 = vld [vmem:[%s200 + $0x218] sm:$0xff]
        %v310 = vld [vmem:[%s200 + $0x220] sm:$0xff]
        %v311 = vld [vmem:[%s200 + $0x228] sm:$0xff]
        %v312 = vld [vmem:[%s200 + $0x230] sm:$0xff]
        %v313 = vld [vmem:[%s200 + $0x238] sm:$0xff]
        %v314 = vld [vmem:[%s200 + $0x240] sm:$0xff]
        %v315 = vld [vmem:[%s200 + $0x248] sm:$0xff]
        %v316 = vld [vmem:[%s200 + $0x250] sm:$0xff]
        %v317 = vld [vmem:[%s200 + $0x258] sm:$0xff]
        %v318 = vld [vmem:[%s200 + $0x260] sm:$0xff]
        %v319 = vld [vmem:[%s200 + $0x268] sm:$0xff]
        %v320 = vld [vmem:[%s200 + $0x270] sm:$0xff]
        %v321 = vld [vmem:[%s200 + $0x278] sm:$0xff]
        %v322 = vld [vmem:[%s200 + $0x280] sm:$0xff]
        %v323 = vld [vmem:[%s200 + $0x288] sm:$0xff]
        %v324 = vld [vmem:[%s200 + $0x290] sm:$0xff]
        %v325 = vld [vmem:[%s200 + $0x298] sm:$0xff]
        %v326 = vld [vmem:[%s200 + $0x2a0] sm:$0xff]
        %v327 = vld [vmem:[%s200 + $0x2a8] sm:$0xff]
        %v328 = vld [vmem:[%s200 + $0x2b0] sm:$0xff]
        %v329 = vld [vmem:[%s200 + $0x2b8] sm:$0xff]
        %v330 = vld [vmem:[%s200 + $0x2c0] sm:$0xff]
        %v331 = vld [vmem:[%s200 + $0x2c8] sm:$0xff]
        %v332 = vld [vmem:[%s200 + $0x2d0] sm:$0xff]
        %v333 = vld [vmem:[%s200 + $0x2d8] sm:$0xff]
        %v334 = vld [vmem:[%s200 + $0x2e0] sm:$0xff]
        %v335 = vld [vmem:[%s200 + $0x2e8] sm:$0xff]
        %v336 = vld [vmem:[%s200 + $0x2f0] sm:$0xff]
        %v337 = vld [vmem:[%s200 + $0x2f8] sm:$0xff]
        %v338 = vld [vmem:[%s200 + $0x300] sm:$0xff]
        %v339 = vld [vmem:[%s200 + $0x308] sm:$0xff]
        %v340 = vld [vmem:[%s200 + $0x310] sm:$0xff]
        %v341 = vld [vmem:[%s200 + $0x318] sm:$0xff]
        %v342 = vld [vmem:[%s200 + $0x320] sm:$0xff]
        %v343 = vld [vmem:[%s200 + $0x328] sm:$0xff]
        %v344 = vld [vmem:[%s200 + $0x330] sm:$0xff]
        %v345 = vld [vmem:[%s200 + $0x338] sm:$0xff]
        %v346 = vld [vmem:[%s200 + $0x340] sm:$0xff]
        %v347 = vld [vmem:[%s200 + $0x348] sm:$0xff]
        %v348 = vld [vmem:[%s200 + $0x350] sm:$0xff]
        %v349 = vld [vmem:[%s200 + $0x358] sm:$0xff]
        %v350 = vld [vmem:[%s200 + $0x360] sm:$0xff]
        %v351 = vld [vmem:[%s200 + $0x368] sm:$0xff]
        %v352 = vld [vmem:[%s200 + $0x370] sm:$0xff]
        %v353 = vld [vmem:[%s200 + $0x378] sm:$0xff]
        %v354 = vld [vmem:[%s200 + $0x380] sm:$0xff]
        %v355 = vld [vmem:[%s200 + $0x388] sm:$0xff]
        %v356 = vld [vmem:[%s200 + $0x390] sm:$0xff]
        %v357 = vld [vmem:[%s200 + $0x398] sm:$0xff]
        %v358 = vld [vmem:[%s200 + $0x3a0] sm:$0xff]
        %v359 = vld [vmem:[%s200 + $0x3a8] sm:$0xff]
        %v360 = vld [vmem:[%s200 + $0x3b0] sm:$0xff]
        %v361 = vld [vmem:[%s200 + $0x3b8] sm:$0xff]
        %v362 = vld [vmem:[%s200 + $0x3c0] sm:$0xff]
        %v363 = vld [vmem:[%s200 + $0x3c8] sm:$0xff]
        %v364 = vld [vmem:[%s200 + $0x3d0] sm:$0xff]
        %v365 = vld [vmem:[%s200 + $0x3d8] sm:$0xff]
        %v366 = vld [vmem:[%s200 + $0x3e0] sm:$0xff]
        %v367 = vld [vmem:[%s200 + $0x3e8] sm:$0xff]
        %v368 = vld [vmem:[%s200 + $0x3f0] sm:$0xff]
        %v369 = vld [vmem:[%s200 + $0x3f8] sm:$0xff]
        %v370 = vld [vmem:[%s209] ss:$4 sm:$0xf]
        %v372 = vlaneseq
        %v373 = vshrl.u32 %v372, 7
        %v374 = vsub.s32 0, %v373
        %v375 = vrot.slane %v370, %v374
        %v376 = vlaneseq
        %v377 = vshrl.u32 %v376, 7
        %v378 = vsub.s32 1, %v377
        %v379 = vrot.slane %v370, %v378
        %v380 = vlaneseq
        %v381 = vshrl.u32 %v380, 7
        %v382 = vsub.s32 2, %v381
        %v383 = vrot.slane %v370, %v382
        %v384 = vlaneseq
        %v385 = vshrl.u32 %v384, 7
        %v386 = vsub.s32 3, %v385
        %v387 = vrot.slane %v370, %v386
        %v394 = vunpack.c.l.b16 %v240
        %v395 = vunpack.c.h.b16 %v240
        %v396 = vunpack.c.l.b16 %v241
        %v397 = vunpack.c.h.b16 %v241
        %v398 = vpack.c.b16 %v394, %v394
        %v399 = vpack.c.b16 %v395, %v395
        %v400 = vpack.c.b16 %v396, %v396
        %v401 = vpack.c.b16 %v397, %v397
        %v534 = vunpack.c.l.b16 %v242
        %v535 = vunpack.c.h.b16 %v242
        %v536 = vunpack.c.l.b16 %v243
        %v537 = vunpack.c.h.b16 %v243
        %v538 = vunpack.c.l.b16 %v244
        %v539 = vunpack.c.h.b16 %v244
        %v540 = vunpack.c.l.b16 %v245
        %v541 = vunpack.c.h.b16 %v245
        %v542 = vunpack.c.l.b16 %v246
        %v543 = vunpack.c.h.b16 %v246
        %v544 = vunpack.c.l.b16 %v247
        %v545 = vunpack.c.h.b16 %v247
        %v546 = vunpack.c.l.b16 %v248
        %v547 = vunpack.c.h.b16 %v248
        %v548 = vunpack.c.l.b16 %v249
        %v549 = vunpack.c.h.b16 %v249
        %v550 = vunpack.c.l.b16 %v250
        %v551 = vunpack.c.h.b16 %v250
        %v552 = vunpack.c.l.b16 %v251
        %v553 = vunpack.c.h.b16 %v251
        %v554 = vunpack.c.l.b16 %v252
        %v555 = vunpack.c.h.b16 %v252
        %v556 = vunpack.c.l.b16 %v253
        %v557 = vunpack.c.h.b16 %v253
        %v558 = vunpack.c.l.b16 %v254
        %v559 = vunpack.c.h.b16 %v254
        %v560 = vunpack.c.l.b16 %v255
        %v561 = vunpack.c.h.b16 %v255
        %v562 = vunpack.c.l.b16 %v256
        %v563 = vunpack.c.h.b16 %v256
        %v564 = vunpack.c.l.b16 %v257
        %v565 = vunpack.c.h.b16 %v257
        %v566 = vunpack.c.l.b16 %v258
        %v567 = vunpack.c.h.b16 %v258
        %v568 = vunpack.c.l.b16 %v259
        %v569 = vunpack.c.h.b16 %v259
        %v570 = vunpack.c.l.b16 %v260
        %v571 = vunpack.c.h.b16 %v260
        %v572 = vunpack.c.l.b16 %v261
        %v573 = vunpack.c.h.b16 %v261
        %v574 = vunpack.c.l.b16 %v262
        %v575 = vunpack.c.h.b16 %v262
        %v576 = vunpack.c.l.b16 %v263
        %v577 = vunpack.c.h.b16 %v263
        %v578 = vunpack.c.l.b16 %v264
        %v579 = vunpack.c.h.b16 %v264
        %v580 = vunpack.c.l.b16 %v265
        %v581 = vunpack.c.h.b16 %v265
        %v582 = vunpack.c.l.b16 %v266
        %v583 = vunpack.c.h.b16 %v266
        %v584 = vunpack.c.l.b16 %v267
        %v585 = vunpack.c.h.b16 %v267
        %v586 = vunpack.c.l.b16 %v268
        %v587 = vunpack.c.h.b16 %v268
        %v588 = vunpack.c.l.b16 %v269
        %v589 = vunpack.c.h.b16 %v269
        %v590 = vunpack.c.l.b16 %v270
        %v591 = vunpack.c.h.b16 %v270
        %v592 = vunpack.c.l.b16 %v271
        %v593 = vunpack.c.h.b16 %v271
        %v594 = vunpack.c.l.b16 %v272
        %v595 = vunpack.c.h.b16 %v272
        %v596 = vunpack.c.l.b16 %v273
        %v597 = vunpack.c.h.b16 %v273
        %v598 = vunpack.c.l.b16 %v274
        %v599 = vunpack.c.h.b16 %v274
        %v600 = vunpack.c.l.b16 %v275
        %v601 = vunpack.c.h.b16 %v275
        %v602 = vunpack.c.l.b16 %v276
        %v603 = vunpack.c.h.b16 %v276
        %v604 = vunpack.c.l.b16 %v277
        %v605 = vunpack.c.h.b16 %v277
        %v606 = vunpack.c.l.b16 %v278
        %v607 = vunpack.c.h.b16 %v278
        %v608 = vunpack.c.l.b16 %v279
        %v609 = vunpack.c.h.b16 %v279
        %v610 = vunpack.c.l.b16 %v280
        %v611 = vunpack.c.h.b16 %v280
        %v612 = vunpack.c.l.b16 %v281
        %v613 = vunpack.c.h.b16 %v281
        %v614 = vunpack.c.l.b16 %v282
        %v615 = vunpack.c.h.b16 %v282
        %v616 = vunpack.c.l.b16 %v283
        %v617 = vunpack.c.h.b16 %v283
        %v618 = vunpack.c.l.b16 %v284
        %v619 = vunpack.c.h.b16 %v284
        %v620 = vunpack.c.l.b16 %v285
        %v621 = vunpack.c.h.b16 %v285
        %v622 = vunpack.c.l.b16 %v286
        %v623 = vunpack.c.h.b16 %v286
        %v624 = vunpack.c.l.b16 %v287
        %v625 = vunpack.c.h.b16 %v287
        %v626 = vunpack.c.l.b16 %v288
        %v627 = vunpack.c.h.b16 %v288
        %v628 = vunpack.c.l.b16 %v289
        %v629 = vunpack.c.h.b16 %v289
        %v630 = vunpack.c.l.b16 %v290
        %v631 = vunpack.c.h.b16 %v290
        %v632 = vunpack.c.l.b16 %v291
        %v633 = vunpack.c.h.b16 %v291
        %v634 = vunpack.c.l.b16 %v292
        %v635 = vunpack.c.h.b16 %v292
        %v636 = vunpack.c.l.b16 %v293
        %v637 = vunpack.c.h.b16 %v293
        %v638 = vunpack.c.l.b16 %v294
        %v639 = vunpack.c.h.b16 %v294
        %v640 = vunpack.c.l.b16 %v295
        %v641 = vunpack.c.h.b16 %v295
        %v642 = vunpack.c.l.b16 %v296
        %v643 = vunpack.c.h.b16 %v296
        %v644 = vunpack.c.l.b16 %v297
        %v645 = vunpack.c.h.b16 %v297
        %v646 = vunpack.c.l.b16 %v298
        %v647 = vunpack.c.h.b16 %v298
        %v648 = vunpack.c.l.b16 %v299
        %v649 = vunpack.c.h.b16 %v299
        %v650 = vunpack.c.l.b16 %v300
        %v651 = vunpack.c.h.b16 %v300
        %v652 = vunpack.c.l.b16 %v301
        %v653 = vunpack.c.h.b16 %v301
        %v654 = vunpack.c.l.b16 %v302
        %v655 = vunpack.c.h.b16 %v302
        %v656 = vunpack.c.l.b16 %v303
        %v657 = vunpack.c.h.b16 %v303
        %v658 = vunpack.c.l.b16 %v304
        %v659 = vunpack.c.h.b16 %v304
        %v660 = vunpack.c.l.b16 %v305
        %v661 = vunpack.c.h.b16 %v305
        %v662 = vunpack.c.l.b16 %v306
        %v663 = vunpack.c.h.b16 %v306
        %v664 = vunpack.c.l.b16 %v307
        %v665 = vunpack.c.h.b16 %v307
        %v666 = vunpack.c.l.b16 %v308
        %v667 = vunpack.c.h.b16 %v308
        %v668 = vunpack.c.l.b16 %v309
        %v669 = vunpack.c.h.b16 %v309
        %v670 = vunpack.c.l.b16 %v310
        %v671 = vunpack.c.h.b16 %v310
        %v672 = vunpack.c.l.b16 %v311
        %v673 = vunpack.c.h.b16 %v311
        %v674 = vunpack.c.l.b16 %v312
        %v675 = vunpack.c.h.b16 %v312
        %v676 = vunpack.c.l.b16 %v313
        %v677 = vunpack.c.h.b16 %v313
        %v678 = vunpack.c.l.b16 %v314
        %v679 = vunpack.c.h.b16 %v314
        %v680 = vunpack.c.l.b16 %v315
        %v681 = vunpack.c.h.b16 %v315
        %v682 = vunpack.c.l.b16 %v316
        %v683 = vunpack.c.h.b16 %v316
        %v684 = vunpack.c.l.b16 %v317
        %v685 = vunpack.c.h.b16 %v317
        %v686 = vunpack.c.l.b16 %v318
        %v687 = vunpack.c.h.b16 %v318
        %v688 = vunpack.c.l.b16 %v319
        %v689 = vunpack.c.h.b16 %v319
        %v690 = vunpack.c.l.b16 %v320
        %v691 = vunpack.c.h.b16 %v320
        %v692 = vunpack.c.l.b16 %v321
        %v693 = vunpack.c.h.b16 %v321
        %v694 = vunpack.c.l.b16 %v322
        %v695 = vunpack.c.h.b16 %v322
        %v696 = vunpack.c.l.b16 %v323
        %v697 = vunpack.c.h.b16 %v323
        %v698 = vunpack.c.l.b16 %v324
        %v699 = vunpack.c.h.b16 %v324
        %v700 = vunpack.c.l.b16 %v325
        %v701 = vunpack.c.h.b16 %v325
        %v702 = vunpack.c.l.b16 %v326
        %v703 = vunpack.c.h.b16 %v326
        %v704 = vunpack.c.l.b16 %v327
        %v705 = vunpack.c.h.b16 %v327
        %v706 = vunpack.c.l.b16 %v328
        %v707 = vunpack.c.h.b16 %v328
        %v708 = vunpack.c.l.b16 %v329
        %v709 = vunpack.c.h.b16 %v329
        %v710 = vunpack.c.l.b16 %v330
        %v711 = vunpack.c.h.b16 %v330
        %v712 = vunpack.c.l.b16 %v331
        %v713 = vunpack.c.h.b16 %v331
        %v714 = vunpack.c.l.b16 %v332
        %v715 = vunpack.c.h.b16 %v332
        %v716 = vunpack.c.l.b16 %v333
        %v717 = vunpack.c.h.b16 %v333
        %v718 = vunpack.c.l.b16 %v334
        %v719 = vunpack.c.h.b16 %v334
        %v720 = vunpack.c.l.b16 %v335
        %v721 = vunpack.c.h.b16 %v335
        %v722 = vunpack.c.l.b16 %v336
        %v723 = vunpack.c.h.b16 %v336
        %v724 = vunpack.c.l.b16 %v337
        %v725 = vunpack.c.h.b16 %v337
        %v726 = vunpack.c.l.b16 %v338
        %v727 = vunpack.c.h.b16 %v338
        %v728 = vunpack.c.l.b16 %v339
        %v729 = vunpack.c.h.b16 %v339
        %v730 = vunpack.c.l.b16 %v340
        %v731 = vunpack.c.h.b16 %v340
        %v732 = vunpack.c.l.b16 %v341
        %v733 = vunpack.c.h.b16 %v341
        %v734 = vunpack.c.l.b16 %v342
        %v735 = vunpack.c.h.b16 %v342
        %v736 = vunpack.c.l.b16 %v343
        %v737 = vunpack.c.h.b16 %v343
        %v738 = vunpack.c.l.b16 %v344
        %v739 = vunpack.c.h.b16 %v344
        %v740 = vunpack.c.l.b16 %v345
        %v741 = vunpack.c.h.b16 %v345
        %v742 = vunpack.c.l.b16 %v346
        %v743 = vunpack.c.h.b16 %v346
        %v744 = vunpack.c.l.b16 %v347
        %v745 = vunpack.c.h.b16 %v347
        %v746 = vunpack.c.l.b16 %v348
        %v747 = vunpack.c.h.b16 %v348
        %v748 = vunpack.c.l.b16 %v349
        %v749 = vunpack.c.h.b16 %v349
        %v750 = vunpack.c.l.b16 %v350
        %v751 = vunpack.c.h.b16 %v350
        %v752 = vunpack.c.l.b16 %v351
        %v753 = vunpack.c.h.b16 %v351
        %v754 = vunpack.c.l.b16 %v352
        %v755 = vunpack.c.h.b16 %v352
        %v756 = vunpack.c.l.b16 %v353
        %v757 = vunpack.c.h.b16 %v353
        %v758 = vunpack.c.l.b16 %v354
        %v759 = vunpack.c.h.b16 %v354
        %v760 = vunpack.c.l.b16 %v355
        %v761 = vunpack.c.h.b16 %v355
        %v762 = vunpack.c.l.b16 %v356
        %v763 = vunpack.c.h.b16 %v356
        %v764 = vunpack.c.l.b16 %v357
        %v765 = vunpack.c.h.b16 %v357
        %v766 = vunpack.c.l.b16 %v358
        %v767 = vunpack.c.h.b16 %v358
        %v768 = vunpack.c.l.b16 %v359
        %v769 = vunpack.c.h.b16 %v359
        %v770 = vunpack.c.l.b16 %v360
        %v771 = vunpack.c.h.b16 %v360
        %v772 = vunpack.c.l.b16 %v361
        %v773 = vunpack.c.h.b16 %v361
        %v774 = vunpack.c.l.b16 %v362
        %v775 = vunpack.c.h.b16 %v362
        %v776 = vunpack.c.l.b16 %v363
        %v777 = vunpack.c.h.b16 %v363
        %v778 = vunpack.c.l.b16 %v364
        %v779 = vunpack.c.h.b16 %v364
        %v780 = vunpack.c.l.b16 %v365
        %v781 = vunpack.c.h.b16 %v365
        %v782 = vunpack.c.l.b16 %v366
        %v783 = vunpack.c.h.b16 %v366
        %v784 = vunpack.c.l.b16 %v367
        %v785 = vunpack.c.h.b16 %v367
        %v786 = vunpack.c.l.b16 %v368
        %v787 = vunpack.c.h.b16 %v368
        %v788 = vunpack.c.l.b16 %v369
        %v789 = vunpack.c.h.b16 %v369
        %v790 = vpack.c.b16 %v538, %v534
        %v791 = vpack.c.b16 %v539, %v535
        %v792 = vpack.c.b16 %v540, %v536
        %v793 = vpack.c.b16 %v541, %v537
        %v794 = vpack.c.b16 %v546, %v542
        %v795 = vpack.c.b16 %v547, %v543
        %v796 = vpack.c.b16 %v548, %v544
        %v797 = vpack.c.b16 %v549, %v545
        %v798 = vpack.c.b16 %v554, %v550
        %v799 = vpack.c.b16 %v555, %v551
        %v800 = vpack.c.b16 %v556, %v552
        %v801 = vpack.c.b16 %v557, %v553
        %v802 = vpack.c.b16 %v562, %v558
        %v803 = vpack.c.b16 %v563, %v559
        %v804 = vpack.c.b16 %v564, %v560
        %v805 = vpack.c.b16 %v565, %v561
        %v806 = vpack.c.b16 %v570, %v566
        %v807 = vpack.c.b16 %v571, %v567
        %v808 = vpack.c.b16 %v572, %v568
        %v809 = vpack.c.b16 %v573, %v569
        %v810 = vpack.c.b16 %v578, %v574
        %v811 = vpack.c.b16 %v579, %v575
        %v812 = vpack.c.b16 %v580, %v576
        %v813 = vpack.c.b16 %v581, %v577
        %v814 = vpack.c.b16 %v586, %v582
        %v815 = vpack.c.b16 %v587, %v583
        %v816 = vpack.c.b16 %v588, %v584
        %v817 = vpack.c.b16 %v589, %v585
        %v818 = vpack.c.b16 %v594, %v590
        %v819 = vpack.c.b16 %v595, %v591
        %v820 = vpack.c.b16 %v596, %v592
        %v821 = vpack.c.b16 %v597, %v593
        %v822 = vpack.c.b16 %v602, %v598
        %v823 = vpack.c.b16 %v603, %v599
        %v824 = vpack.c.b16 %v604, %v600
        %v825 = vpack.c.b16 %v605, %v601
        %v826 = vpack.c.b16 %v610, %v606
        %v827 = vpack.c.b16 %v611, %v607
        %v828 = vpack.c.b16 %v612, %v608
        %v829 = vpack.c.b16 %v613, %v609
        %v830 = vpack.c.b16 %v618, %v614
        %v831 = vpack.c.b16 %v619, %v615
        %v832 = vpack.c.b16 %v620, %v616
        %v833 = vpack.c.b16 %v621, %v617
        %v834 = vpack.c.b16 %v626, %v622
        %v835 = vpack.c.b16 %v627, %v623
        %v836 = vpack.c.b16 %v628, %v624
        %v837 = vpack.c.b16 %v629, %v625
        %v838 = vpack.c.b16 %v634, %v630
        %v839 = vpack.c.b16 %v635, %v631
        %v840 = vpack.c.b16 %v636, %v632
        %v841 = vpack.c.b16 %v637, %v633
        %v842 = vpack.c.b16 %v642, %v638
        %v843 = vpack.c.b16 %v643, %v639
        %v844 = vpack.c.b16 %v644, %v640
        %v845 = vpack.c.b16 %v645, %v641
        %v846 = vpack.c.b16 %v650, %v646
        %v847 = vpack.c.b16 %v651, %v647
        %v848 = vpack.c.b16 %v652, %v648
        %v849 = vpack.c.b16 %v653, %v649
        %v850 = vpack.c.b16 %v658, %v654
        %v851 = vpack.c.b16 %v659, %v655
        %v852 = vpack.c.b16 %v660, %v656
        %v853 = vpack.c.b16 %v661, %v657
        %v854 = vpack.c.b16 %v666, %v662
        %v855 = vpack.c.b16 %v667, %v663
        %v856 = vpack.c.b16 %v668, %v664
        %v857 = vpack.c.b16 %v669, %v665
        %v858 = vpack.c.b16 %v674, %v670
        %v859 = vpack.c.b16 %v675, %v671
        %v860 = vpack.c.b16 %v676, %v672
        %v861 = vpack.c.b16 %v677, %v673
        %v862 = vpack.c.b16 %v682, %v678
        %v863 = vpack.c.b16 %v683, %v679
        %v864 = vpack.c.b16 %v684, %v680
        %v865 = vpack.c.b16 %v685, %v681
        %v866 = vpack.c.b16 %v690, %v686
        %v867 = vpack.c.b16 %v691, %v687
        %v868 = vpack.c.b16 %v692, %v688
        %v869 = vpack.c.b16 %v693, %v689
        %v870 = vpack.c.b16 %v698, %v694
        %v871 = vpack.c.b16 %v699, %v695
        %v872 = vpack.c.b16 %v700, %v696
        %v873 = vpack.c.b16 %v701, %v697
        %v874 = vpack.c.b16 %v706, %v702
        %v875 = vpack.c.b16 %v707, %v703
        %v876 = vpack.c.b16 %v708, %v704
        %v877 = vpack.c.b16 %v709, %v705
        %v878 = vpack.c.b16 %v714, %v710
        %v879 = vpack.c.b16 %v715, %v711
        %v880 = vpack.c.b16 %v716, %v712
        %v881 = vpack.c.b16 %v717, %v713
        %v882 = vpack.c.b16 %v722, %v718
        %v883 = vpack.c.b16 %v723, %v719
        %v884 = vpack.c.b16 %v724, %v720
        %v885 = vpack.c.b16 %v725, %v721
        %v886 = vpack.c.b16 %v730, %v726
        %v887 = vpack.c.b16 %v731, %v727
        %v888 = vpack.c.b16 %v732, %v728
        %v889 = vpack.c.b16 %v733, %v729
        %v890 = vpack.c.b16 %v738, %v734
        %v891 = vpack.c.b16 %v739, %v735
        %v892 = vpack.c.b16 %v740, %v736
        %v893 = vpack.c.b16 %v741, %v737
        %v894 = vpack.c.b16 %v746, %v742
        %v895 = vpack.c.b16 %v747, %v743
        %v896 = vpack.c.b16 %v748, %v744
        %v897 = vpack.c.b16 %v749, %v745
        %v898 = vpack.c.b16 %v754, %v750
        %v899 = vpack.c.b16 %v755, %v751
        %v900 = vpack.c.b16 %v756, %v752
        %v901 = vpack.c.b16 %v757, %v753
        %v902 = vpack.c.b16 %v762, %v758
        %v903 = vpack.c.b16 %v763, %v759
        %v904 = vpack.c.b16 %v764, %v760
        %v905 = vpack.c.b16 %v765, %v761
        %v906 = vpack.c.b16 %v770, %v766
        %v907 = vpack.c.b16 %v771, %v767
        %v908 = vpack.c.b16 %v772, %v768
        %v909 = vpack.c.b16 %v773, %v769
        %v910 = vpack.c.b16 %v778, %v774
        %v911 = vpack.c.b16 %v779, %v775
        %v912 = vpack.c.b16 %v780, %v776
        %v913 = vpack.c.b16 %v781, %v777
        %v914 = vpack.c.b16 %v786, %v782
        %v915 = vpack.c.b16 %v787, %v783
        %v916 = vpack.c.b16 %v788, %v784
        %v917 = vpack.c.b16 %v789, %v785
        %1046 = vmatprep.subr.bf16.mxu0 %v791
        %1047 = vmatpush1.bf16.msra.mxu0 %v790
        %1048 = vmatprep.subr.bf16.mxu0 %v795
        %1049 = vmatpush1.bf16.msra.mxu0 %v794
        %1050 = vmatprep.subr.bf16.mxu0 %v799
        %1051 = vmatpush1.bf16.msra.mxu0 %v798
        %1052 = vmatprep.subr.bf16.mxu0 %v803
        %1053 = vmatpush1.bf16.msra.mxu0 %v802
        %1054 = vmatprep.subr.bf16.mxu0 %v807
        %1055 = vmatpush1.bf16.msra.mxu0 %v806
        %1056 = vmatprep.subr.bf16.mxu0 %v811
        %1057 = vmatpush1.bf16.msra.mxu0 %v810
        %1058 = vmatprep.subr.bf16.mxu0 %v815
        %1059 = vmatpush1.bf16.msra.mxu0 %v814
        %1060 = vmatprep.subr.bf16.mxu0 %v819
        %1061 = vmatpush1.bf16.msra.mxu0 %v818
        %1062 = vmatprep.subr.bf16.mxu0 %v823
        %1063 = vmatpush1.bf16.msra.mxu0 %v822
        %1064 = vmatprep.subr.bf16.mxu0 %v827
        %1065 = vmatpush1.bf16.msra.mxu0 %v826
        %1066 = vmatprep.subr.bf16.mxu0 %v831
        %1067 = vmatpush1.bf16.msra.mxu0 %v830
        %1068 = vmatprep.subr.bf16.mxu0 %v835
        %1069 = vmatpush1.bf16.msra.mxu0 %v834
        %1070 = vmatprep.subr.bf16.mxu0 %v839
        %1071 = vmatpush1.bf16.msra.mxu0 %v838
        %1072 = vmatprep.subr.bf16.mxu0 %v843
        %1073 = vmatpush1.bf16.msra.mxu0 %v842
        %1074 = vmatprep.subr.bf16.mxu0 %v847
        %1075 = vmatpush1.bf16.msra.mxu0 %v846
        %1076 = vmatprep.subr.bf16.mxu0 %v851
        %1077 = vmatpush1.bf16.msra.mxu0 %v850
        %1078 = vmatprep.mubr.bf16.mxu0 %v399
        %1079 = vmatmul.mubr.bf16.gmra.mrb[0].mxu0 %v398
        %v1080 = vpop.f32.mrb[0].mxu0
        %v1081 = vadd.f32 %v375, %v1080
        %v1082 = vpop.f32.mrb[0].mxu0
        %v1083 = vadd.f32 %v379, %v1082
        %v1084 = vpop.f32.mrb[0].mxu0
        %v1085 = vpop.f32.mrb[0].mxu0
        %1086 = vdwg.mxu0
        %1087 = vmatprep.subr.bf16.mxu0 %v855
        %1088 = vmatpush1.bf16.msra.mxu0 %v854
        %1089 = vmatprep.subr.bf16.mxu0 %v859
        %1090 = vmatpush1.bf16.msra.mxu0 %v858
        %1091 = vmatprep.subr.bf16.mxu0 %v863
        %1092 = vmatpush1.bf16.msra.mxu0 %v862
        %1093 = vmatprep.subr.bf16.mxu0 %v867
        %1094 = vmatpush1.bf16.msra.mxu0 %v866
        %1095 = vmatprep.subr.bf16.mxu0 %v871
        %1096 = vmatpush1.bf16.msra.mxu0 %v870
        %1097 = vmatprep.subr.bf16.mxu0 %v875
        %1098 = vmatpush1.bf16.msra.mxu0 %v874
        %1099 = vmatprep.subr.bf16.mxu0 %v879
        %1100 = vmatpush1.bf16.msra.mxu0 %v878
        %1101 = vmatprep.subr.bf16.mxu0 %v883
        %1102 = vmatpush1.bf16.msra.mxu0 %v882
        %1103 = vmatprep.subr.bf16.mxu0 %v887
        %1104 = vmatpush1.bf16.msra.mxu0 %v886
        %1105 = vmatprep.subr.bf16.mxu0 %v891
        %1106 = vmatpush1.bf16.msra.mxu0 %v890
        %1107 = vmatprep.subr.bf16.mxu0 %v895
        %1108 = vmatpush1.bf16.msra.mxu0 %v894
        %1109 = vmatprep.subr.bf16.mxu0 %v899
        %1110 = vmatpush1.bf16.msra.mxu0 %v898
        %1111 = vmatprep.subr.bf16.mxu0 %v903
        %1112 = vmatpush1.bf16.msra.mxu0 %v902
        %1113 = vmatprep.subr.bf16.mxu0 %v907
        %1114 = vmatpush1.bf16.msra.mxu0 %v906
        %1115 = vmatprep.subr.bf16.mxu0 %v911
        %1116 = vmatpush1.bf16.msra.mxu0 %v910
        %1117 = vmatprep.subr.bf16.mxu0 %v915
        %1118 = vmatpush1.bf16.msra.mxu0 %v914
        %1119 = vmatprep.mubr.bf16.mxu0 %v401
        %1120 = vmatmul.mubr.bf16.gmra.mrb[0].mxu0 %v400
        %v1121 = vpop.f32.mrb[0].mxu0
        %v1122 = vadd.f32 %v1081, %v1121
        %v1123 = vpop.f32.mrb[0].mxu0
        %v1124 = vadd.f32 %v1083, %v1123
        %v1125 = vpop.f32.mrb[0].mxu0
        %v1126 = vpop.f32.mrb[0].mxu0
        %1127 = vdwg.mxu0
        %1128 = vmatprep.subr.bf16.mxu0 %v793
        %1129 = vmatpush1.bf16.msra.mxu0 %v792
        %1130 = vmatprep.subr.bf16.mxu0 %v797
        %1131 = vmatpush1.bf16.msra.mxu0 %v796
        %1132 = vmatprep.subr.bf16.mxu0 %v801
        %1133 = vmatpush1.bf16.msra.mxu0 %v800
        %1134 = vmatprep.subr.bf16.mxu0 %v805
        %1135 = vmatpush1.bf16.msra.mxu0 %v804
        %1136 = vmatprep.subr.bf16.mxu0 %v809
        %1137 = vmatpush1.bf16.msra.mxu0 %v808
        %1138 = vmatprep.subr.bf16.mxu0 %v813
        %1139 = vmatpush1.bf16.msra.mxu0 %v812
        %1140 = vmatprep.subr.bf16.mxu0 %v817
        %1141 = vmatpush1.bf16.msra.mxu0 %v816
        %1142 = vmatprep.subr.bf16.mxu0 %v821
        %1143 = vmatpush1.bf16.msra.mxu0 %v820
        %1144 = vmatprep.subr.bf16.mxu0 %v825
        %1145 = vmatpush1.bf16.msra.mxu0 %v824
        %1146 = vmatprep.subr.bf16.mxu0 %v829
        %1147 = vmatpush1.bf16.msra.mxu0 %v828
        %1148 = vmatprep.subr.bf16.mxu0 %v833
        %1149 = vmatpush1.bf16.msra.mxu0 %v832
        %1150 = vmatprep.subr.bf16.mxu0 %v837
        %1151 = vmatpush1.bf16.msra.mxu0 %v836
        %1152 = vmatprep.subr.bf16.mxu0 %v841
        %1153 = vmatpush1.bf16.msra.mxu0 %v840
        %1154 = vmatprep.subr.bf16.mxu0 %v845
        %1155 = vmatpush1.bf16.msra.mxu0 %v844
        %1156 = vmatprep.subr.bf16.mxu0 %v849
        %1157 = vmatpush1.bf16.msra.mxu0 %v848
        %1158 = vmatprep.subr.bf16.mxu0 %v853
        %1159 = vmatpush1.bf16.msra.mxu0 %v852
        %1160 = vmatprep.mubr.bf16.mxu0 %v399
        %1161 = vmatmul.mubr.bf16.gmra.mrb[0].mxu0 %v398
        %v1162 = vpop.f32.mrb[0].mxu0
        %v1163 = vadd.f32 %v383, %v1162
        %v1164 = vpop.f32.mrb[0].mxu0
        %v1165 = vadd.f32 %v387, %v1164
        %v1166 = vpop.f32.mrb[0].mxu0
        %v1167 = vpop.f32.mrb[0].mxu0
        %1168 = vdwg.mxu0
        %1169 = vmatprep.subr.bf16.mxu0 %v857
        %1170 = vmatpush1.bf16.msra.mxu0 %v856
        %1171 = vmatprep.subr.bf16.mxu0 %v861
        %1172 = vmatpush1.bf16.msra.mxu0 %v860
        %1173 = vmatprep.subr.bf16.mxu0 %v865
        %1174 = vmatpush1.bf16.msra.mxu0 %v864
        %1175 = vmatprep.subr.bf16.mxu0 %v869
        %1176 = vmatpush1.bf16.msra.mxu0 %v868
        %1177 = vmatprep.subr.bf16.mxu0 %v873
        %1178 = vmatpush1.bf16.msra.mxu0 %v872
        %1179 = vmatprep.subr.bf16.mxu0 %v877
        %1180 = vmatpush1.bf16.msra.mxu0 %v876
        %1181 = vmatprep.subr.bf16.mxu0 %v881
        %1182 = vmatpush1.bf16.msra.mxu0 %v880
        %1183 = vmatprep.subr.bf16.mxu0 %v885
        %1184 = vmatpush1.bf16.msra.mxu0 %v884
        %1185 = vmatprep.subr.bf16.mxu0 %v889
        %1186 = vmatpush1.bf16.msra.mxu0 %v888
        %1187 = vmatprep.subr.bf16.mxu0 %v893
        %1188 = vmatpush1.bf16.msra.mxu0 %v892
        %1189 = vmatprep.subr.bf16.mxu0 %v897
        %1190 = vmatpush1.bf16.msra.mxu0 %v896
        %1191 = vmatprep.subr.bf16.mxu0 %v901
        %1192 = vmatpush1.bf16.msra.mxu0 %v900
        %1193 = vmatprep.subr.bf16.mxu0 %v905
        %1194 = vmatpush1.bf16.msra.mxu0 %v904
        %1195 = vmatprep.subr.bf16.mxu0 %v909
        %1196 = vmatpush1.bf16.msra.mxu0 %v908
        %1197 = vmatprep.subr.bf16.mxu0 %v913
        %1198 = vmatpush1.bf16.msra.mxu0 %v912
        %1199 = vmatprep.subr.bf16.mxu0 %v917
        %1200 = vmatpush1.bf16.msra.mxu0 %v916
        %1201 = vmatprep.mubr.bf16.mxu0 %v401
        %1202 = vmatmul.mubr.bf16.gmra.mrb[0].mxu0 %v400
        %v1203 = vpop.f32.mrb[0].mxu0
        %v1204 = vadd.f32 %v1163, %v1203
        %v1205 = vpop.f32.mrb[0].mxu0
        %v1206 = vadd.f32 %v1165, %v1205
        %v1207 = vpop.f32.mrb[0].mxu0
        %v1208 = vpop.f32.mrb[0].mxu0
        %1209 = vdwg.mxu0
        %v1210 = vrot.slane %v1122, 4
        %v1211 = vadd.f32 %v1122, %v1210
        %v1212 = vrot.slane %v1211, 2
        %v1213 = vadd.f32 %v1211, %v1212
        %v1214 = vrot.slane %v1213, 1
        %v1215 = vadd.f32 %v1213, %v1214
        %v1216 = vrot.slane %v1124, 4
        %v1217 = vadd.f32 %v1124, %v1216
        %v1218 = vrot.slane %v1217, 2
        %v1219 = vadd.f32 %v1217, %v1218
        %v1220 = vrot.slane %v1219, 1
        %v1221 = vadd.f32 %v1219, %v1220
        %v1222 = vrot.slane %v1204, 4
        %v1223 = vadd.f32 %v1204, %v1222
        %v1224 = vrot.slane %v1223, 2
        %v1225 = vadd.f32 %v1223, %v1224
        %v1226 = vrot.slane %v1225, 1
        %v1227 = vadd.f32 %v1225, %v1226
        %v1228 = vrot.slane %v1206, 4
        %v1229 = vadd.f32 %v1206, %v1228
        %v1230 = vrot.slane %v1229, 2
        %v1231 = vadd.f32 %v1229, %v1230
        %v1232 = vrot.slane %v1231, 1
        %v1233 = vadd.f32 %v1231, %v1232
        %v1234 = vrcp.pop 8.0
        %v1235 = vmul.f32 %v1215, %v1234
        %v1236 = vmul.f32 %v1221, %v1234
        %v1237 = vmul.f32 %v1227, %v1234
        %v1238 = vmul.f32 %v1233, %v1234
        %v1239 = vsub.f32 %v1122, %v1235
        %v1240 = vsub.f32 %v1124, %v1236
        %v1241 = vsub.f32 %v1204, %v1237
        %v1242 = vsub.f32 %v1206, %v1238
        %v1243 = vmul.f32 %v1239, %v1239
        %v1244 = vmul.f32 %v1240, %v1240
        %v1245 = vmul.f32 %v1241, %v1241
        %v1246 = vmul.f32 %v1242, %v1242
        %v1247 = vrot.slane %v1243, 4
        %v1248 = vadd.f32 %v1243, %v1247
        %v1249 = vrot.slane %v1248, 2
        %v1250 = vadd.f32 %v1248, %v1249
        %v1251 = vrot.slane %v1250, 1
        %v1252 = vadd.f32 %v1250, %v1251
        %v1253 = vrot.slane %v1244, 4
        %v1254 = vadd.f32 %v1244, %v1253
        %v1255 = vrot.slane %v1254, 2
        %v1256 = vadd.f32 %v1254, %v1255
        %v1257 = vrot.slane %v1256, 1
        %v1258 = vadd.f32 %v1256, %v1257
        %v1259 = vrot.slane %v1245, 4
        %v1260 = vadd.f32 %v1245, %v1259
        %v1261 = vrot.slane %v1260, 2
        %v1262 = vadd.f32 %v1260, %v1261
        %v1263 = vrot.slane %v1262, 1
        %v1264 = vadd.f32 %v1262, %v1263
        %v1265 = vrot.slane %v1246, 4
        %v1266 = vadd.f32 %v1246, %v1265
        %v1267 = vrot.slane %v1266, 2
        %v1268 = vadd.f32 %v1266, %v1267
        %v1269 = vrot.slane %v1268, 1
        %v1270 = vadd.f32 %v1268, %v1269
        %v1271 = vmul.f32 %v1252, %v1234
        %v1272 = vmul.f32 %v1258, %v1234
        %v1273 = vmul.f32 %v1264, %v1234
        %v1274 = vmul.f32 %v1270, %v1234
        %v1275 = vadd.f32 %v1271, 1e-05
        %v1276 = vadd.f32 %v1272, 1e-05
        %v1277 = vadd.f32 %v1273, 1e-05
        %v1278 = vadd.f32 %v1274, 1e-05
        %v1279 = vrsqrt.pop %v1275
        %v1280 = vrsqrt.pop %v1276
        %v1281 = vrsqrt.pop %v1277
        %v1282 = vrsqrt.pop %v1278
        %v1283 = vmul.f32 %v1239, %v1279
        %v1284 = vmul.f32 %v1240, %v1280
        %v1285 = vmul.f32 %v1241, %v1281
        %v1286 = vmul.f32 %v1242, %v1282
        %s1287 = scalar_lea.vmem %s209, 1 [#allocation7]
        %v1288 = vld [vmem:[%s1287] ss:$4 sm:$0xf]
        %v1290 = vlaneseq
        %v1291 = vshrl.u32 %v1290, 7
        %v1292 = vsub.s32 0, %v1291
        %v1293 = vrot.slane %v1288, %v1292
        %v1294 = vlaneseq
        %v1295 = vshrl.u32 %v1294, 7
        %v1296 = vsub.s32 1, %v1295
        %v1297 = vrot.slane %v1288, %v1296
        %v1298 = vlaneseq
        %v1299 = vshrl.u32 %v1298, 7
        %v1300 = vsub.s32 2, %v1299
        %v1301 = vrot.slane %v1288, %v1300
        %v1302 = vlaneseq
        %v1303 = vshrl.u32 %v1302, 7
        %v1304 = vsub.s32 3, %v1303
        %v1305 = vrot.slane %v1288, %v1304
        %v1310 = vmul.f32 %v1283, %v1293
        %v1311 = vmul.f32 %v1284, %v1297
        %v1312 = vmul.f32 %v1285, %v1301
        %v1313 = vmul.f32 %v1286, %v1305
        %s1314 = scalar_lea.vmem %s209, 2 [#allocation7]
        %v1315 = vld [vmem:[%s1314] ss:$4 sm:$0xf]
        %v1317 = vlaneseq
        %v1318 = vshrl.u32 %v1317, 7
        %v1319 = vsub.s32 0, %v1318
        %v1320 = vrot.slane %v1315, %v1319
        %v1321 = vlaneseq
        %v1322 = vshrl.u32 %v1321, 7
        %v1323 = vsub.s32 1, %v1322
        %v1324 = vrot.slane %v1315, %v1323
        %v1325 = vlaneseq
        %v1326 = vshrl.u32 %v1325, 7
        %v1327 = vsub.s32 2, %v1326
        %v1328 = vrot.slane %v1315, %v1327
        %v1329 = vlaneseq
        %v1330 = vshrl.u32 %v1329, 7
        %v1331 = vsub.s32 3, %v1330
        %v1332 = vrot.slane %v1315, %v1331
        %v1337 = vadd.f32 %v1310, %v1320
        %v1338 = vadd.f32 %v1311, %v1324
        %v1339 = vadd.f32 %v1312, %v1328
        %v1340 = vadd.f32 %v1313, %v1332
        %vm1341 = vcmp.ge.f32.partialorder %v1337, 0.0
        %vm1342 = vcmp.ge.f32.partialorder %v1338, 0.0
        %vm1343 = vcmp.ge.f32.partialorder %v1339, 0.0
        %vm1344 = vcmp.ge.f32.partialorder %v1340, 0.0
        %v1345 = vmul.f32 %v1337, 0.01
        %v1346 = vmul.f32 %v1338, 0.01
        %v1347 = vmul.f32 %v1339, 0.01
        %v1348 = vmul.f32 %v1340, 0.01
        %v1349 = vsel %vm1341, %v1337, %v1345
        %v1350 = vsel %vm1342, %v1338, %v1346
        %v1351 = vsel %vm1343, %v1339, %v1347
        %v1352 = vsel %vm1344, %v1340, %v1348
        %v1353 = vpack.c.bf16 %v1349, %v1349
        %v1354 = vpack.c.bf16 %v1350, %v1350
        %v1355 = vpack.c.bf16 %v1351, %v1351
        %v1356 = vpack.c.bf16 %v1352, %v1352
        %v1361 = vunpack.c.l.b16 %v1353
        %v1362 = vunpack.c.l.b16 %v1354
        %v1363 = vunpack.c.l.b16 %v1355
        %v1364 = vunpack.c.l.b16 %v1356
        %v1365 = vpack.c.b16 %v1362, %v1361
        %v1366 = vpack.c.b16 %v1364, %v1363
        %1369 = vst [vmem:[%s236] sm:$0xff] %v1365
        %1370 = vst [vmem:[%s236 + $0x8] sm:$0xff] %v1366
        %s1371 = sand.u32 %s102, 1
        %s1372 = scalar_lea.sflag [#allocation4], %s1371
        %s1373 = sand.u32 %s102, 1
        %s1374 = smul.addr %s1373, 16
        %s1375 = scalar_lea.vmem [#allocation8], %s1374
        // Predicated region
        $region45: #{tpu_custom_call.1} parent=31 // pred_check
          %p1376 = pneg %p112
        $region46: #{tpu_custom_call.1} parent=31 // pred_check_branch
          %1378 = sbr.rel (%p1376) target = $region48
        $region47: #{tpu_custom_call.1} parent=31 // pred_region
          %s1379 = smul.u32 4, %s21
          %s1381 = ssub.s32 256, 256
          %1382 = vsyncadd %s1372, %s1381
          %s1383 = smul.addr %s1379, 64
          %s1384 = scalar_lea.hbm %s3, %s1383
          %s1386 = sshll.u32 %s1375, 4
          %s1387 = int_to_ptr.vmem [resolvable:$true] %s1386
          %1389 = dma.vmem_to_hbm [thread:$0]  %s1387, 256, %s1384, %s1372
        $region48: #{tpu_custom_call.1} parent=31 // pred_fallthru
          _
      $region32: #{tpu_custom_call.1} parent=5 // pred_fallthru
        _
      %p1390 = scmp.le.s32.totalorder 2, %s16
      // Predicated region
      $region49: #{tpu_custom_call.1} parent=5 // pred_check
        %p1391 = pneg %p1390
      $region50: #{tpu_custom_call.1} parent=5 // pred_check_branch
        %1393 = sbr.rel (%p1391) target = $region52
      $region51: #{tpu_custom_call.1} parent=5 // pred_region
        %s1394 = ssub.s32 %s16, 2
        // Predicated region
        $region53: #{tpu_custom_call.1} parent=51 // pred_check
          %p1395 = pneg %p118
        $region54: #{tpu_custom_call.1} parent=51 // pred_check_branch
          %1397 = sbr.rel (%p1395) target = $region56
        $region55: #{tpu_custom_call.1} parent=51 // pred_region
          %s1398 = sand.u32 %s103, 1
          %s1399 = scalar_lea.sflag [#allocation4], %s1398
          %s1400 = sand.u32 %s103, 1
          %s1401 = smul.addr %s1400, 16
          %s1402 = scalar_lea.vmem [#allocation8], %s1401
          %1403 = dma.done %s1399, 256
        $region56: #{tpu_custom_call.1} parent=51 // pred_fallthru
          _
      $region52: #{tpu_custom_call.1} parent=5 // pred_fallthru
        _
    $region6: #{tpu_custom_call.1} parent=1 // loop_footer
      %s20 = sadd.s32 1, %s16
    $region7: #{tpu_custom_call.1} parent=1 // loop_footer_branch
      %15 = sbr.rel target = $region3
    $region8: #{tpu_custom_call.1} parent=1 // loop_exit
      _
    %1404 = vsyncpa [#allocation3], 1
    %s1405 = scalar_lea.sflag [#allocation3], 1
    %1406 = vsyncpa %s1405, 1
    %1407 = vsyncpa [#allocation6], 1
    %s1408 = scalar_lea.sflag [#allocation6], 1
    %1409 = vsyncpa %s1408, 1
    %1410 = vsyncpa [#allocation4], 1
    %s1411 = scalar_lea.sflag [#allocation4], 1
    %1412 = vsyncpa %s1411, 1

</llo_original>
